<compile_context>
chip_gen: v7x
topology: tpu7x:2x2x1
jax: 0.10.0
libtpu: 0.0.40
codegen_flags: <defaults>
</compile_context>

<pallas_src>
import functools

import numpy as np

import jax
import jax.numpy as jnp
from jax.experimental import pallas as pl
from jax.experimental.pallas import tpu as pltpu


def _attention_kernel(x_ref, r_ref, wk_ref, bk_ref, wv_ref, bv_ref, s_ref, o_ref):
    f32 = jnp.float32

    # ---- Phase 1: AdaptiveAvgPool2d(1) -> pooled query (TB, C) in f32 ------
    # (lane-axis reduce on the XLU; x stays in its native dtype in VMEM).
    xq = jnp.mean(x_ref[...].astype(f32), axis=-1)                      # (TB, C)

    # ---- conv_kv + per-head expansion, folded into (TB,C)@(C,C*d) MXU ------
    #   s_rep[b, i*d+jj] = scale * xq[b, i]
    #   k_rep[b, i*d+jj] = k[b, head(i)*d + jj],   v_rep likewise.
    s_rep = jnp.dot(xq, r_ref[...], preferred_element_type=f32)         # (TB, C*d)
    k_rep = jnp.dot(xq, wk_ref[...], preferred_element_type=f32) + bk_ref[...]
    v_rep = jnp.dot(xq, wv_ref[...], preferred_element_type=f32) + bv_ref[...]

    # ---- Per-head softmax attention on the flat lane-dense tile ------------
    logits = s_rep * k_rep                                               # VPU
    # Row max is a single constant per batch row, hence constant within every
    # head group -> softmax is mathematically unchanged, only stabilised.
    logits = logits - jnp.max(logits, axis=-1, keepdims=True)
    p = jnp.exp(logits)                                                  # EUP
    denom = jnp.dot(p, s_ref[...], preferred_element_type=f32)          # (TB, C)
    numer = jnp.dot(p * v_rep, s_ref[...], preferred_element_type=f32)  # (TB, C)
    out = numer * pl.reciprocal(denom, approx=True)                     # EUP recip
    gate = jax.nn.sigmoid(out) + 1.0        # sigmoid(out)*x + x == (1+gate')*x

    # ---- Phase 2: residual gating, streamed in the input dtype -------------
    # Independent re-read of the VMEM block keeps per-vreg liveness minimal.
    xv = x_ref[...]
    o_ref[...] = (xv * gate[:, :, None].astype(xv.dtype)).astype(o_ref.dtype)


def _pick_batch_tile(B, bytes_per_batch):
    """TB such that blocks are ~2 MiB (past the HBM-roofline knee, fits every
    generation's scoped-VMEM default when double-buffered in+out), prefer >=4
    grid steps when B allows (feeds both v7x TensorCores / hides block DMA),
    and TB divides B so every block is full."""
    tb = max(1, (2 * 1024 * 1024) // bytes_per_batch)
    while tb > 1 and (B + tb - 1) // tb < 4 and tb * bytes_per_batch > 512 * 1024:
        tb //= 2
    tb = min(tb, B)
    while B % tb:
        tb -= 1
    return tb


def attention_forward(x, w_kv, b_kv, num_head):
    """Forward of the PyTorch `Attention` module.

    x:    (B, C, H, W)  NCHW, same as the reference.
    w_kv: (2C, C)       nn.Conv2d(C, 2C, 1) weight with the 1x1 dims squeezed.
    b_kv: (2C,)         conv bias.
    """
    B, C, H, W = x.shape
    assert C % num_head == 0, "channel must be divisible by num_head"
    d = C // num_head
    Cd = C * d
    scale = d ** (-0.5)
    HW = H * W

    # Flat-index bookkeeping for the (TB, C*d) attention tile: column f holds
    # the (query-channel i, key-offset jj) pair with i = f // d, jj = f % d and
    # key/value channel j = head(i)*d + jj.
    f = np.arange(Cd)
    i_idx = f // d
    j_idx = (f // (d * d)) * d + (f % d)

    # Constant expansion / group-sum matrices (host-side constants).
    r_mat = ((np.arange(C)[:, None] == i_idx[None, :]).astype(np.float32)
             * np.float32(scale))                                        # (C, Cd)
    s_mat = (i_idx[:, None] == np.arange(C)[None, :]).astype(np.float32)  # (Cd, C)

    # Fold the 1x1 conv_kv weights/bias and the per-head k/v expansion into
    # single (C, C*d) operands (exact: the expansion is a column selection).
    w32 = w_kv.astype(jnp.float32)
    b32 = b_kv.astype(jnp.float32)
    w_k = jnp.transpose(w32[:C][j_idx, :])            # (C, Cd)
    w_v = jnp.transpose(w32[C:][j_idx, :])            # (C, Cd)
    b_k = b32[:C][j_idx].reshape(1, Cd)
    b_v = b32[C:][j_idx].reshape(1, Cd)

    x2 = x.reshape(B, C, HW)
    tb = _pick_batch_tile(B, C * HW * x.dtype.itemsize)
    grid = (B // tb,)

    out = pl.pallas_call(
        _attention_kernel,
        out_shape=jax.ShapeDtypeStruct((B, C, HW), x.dtype),
        grid=grid,
        in_specs=[
            pl.BlockSpec((tb, C, HW), lambda i: (i, 0, 0)),   # x block (batched)
            pl.BlockSpec((C, Cd), lambda i: (0, 0)),          # q expansion (scale folded)
            pl.BlockSpec((C, Cd), lambda i: (0, 0)),          # folded conv_kv -> k_rep
            pl.BlockSpec((1, Cd), lambda i: (0, 0)),          # folded bias   -> k_rep
            pl.BlockSpec((C, Cd), lambda i: (0, 0)),          # folded conv_kv -> v_rep
            pl.BlockSpec((1, Cd), lambda i: (0, 0)),          # folded bias   -> v_rep
            pl.BlockSpec((Cd, C), lambda i: (0, 0)),          # per-head group-sum
        ],
        out_specs=pl.BlockSpec((tb, C, HW), lambda i: (i, 0, 0)),
        compiler_params=pltpu.CompilerParams(
            dimension_semantics=("parallel",)),
    )(x2, jnp.asarray(r_mat), w_k, b_k, w_v, b_v, jnp.asarray(s_mat))
    return out.reshape(B, C, H, W)


def _reference(x, w_kv, b_kv, num_head):
    """Pure-JAX mirror of the PyTorch forward (for in-script validation)."""
    B, C, H, W = x.shape
    c = C // num_head
    scale = c ** (-0.5)
    xq = jnp.mean(x, axis=(2, 3))                               # avg_pool -> (B, C)
    kv = xq @ w_kv.T + b_kv                                     # 1x1 conv_kv
    k, v = kv[:, :C], kv[:, C:]
    q_ = xq.reshape(B, num_head, c, 1)
    k_ = k.reshape(B, num_head, c, 1)
    v_ = v.reshape(B, num_head, c, 1)
    attn = jnp.matmul(q_, jnp.swapaxes(k_, -2, -1)) * scale     # (B, n, c, c)
    attn = jax.nn.softmax(attn, axis=-1)
    out = jnp.matmul(attn, v_).reshape(B, C)
    gate = jax.nn.sigmoid(out)[:, :, None, None]
    return gate * x + x


if __name__ == "__main__":
    B, C, H, W = 2, 32, 16, 16
    num_head = 4

    key = jax.random.PRNGKey(0)
    kx, kw, kb = jax.random.split(key, 3)
    x = jax.random.normal(kx, (B, C, H, W), jnp.float32)
    w_kv = jax.random.normal(kw, (2 * C, C), jnp.float32) * 0.1
    b_kv = jax.random.normal(kb, (2 * C,), jnp.float32) * 0.1

    fwd = jax.jit(functools.partial(attention_forward, num_head=num_head))
    y = fwd(x, w_kv, b_kv)
    jax.block_until_ready(y)

    ref = _reference(x, w_kv, b_kv, num_head)
    assert y.shape == (B, C, H, W)
    max_err = float(jnp.max(jnp.abs(y - ref)))
    assert jnp.allclose(y, ref, rtol=1e-3, atol=1e-3), f"max_err={max_err}"
    print("KERNEL_OK")
</pallas_src>

<mosaic_0001>
module attributes {stable_mosaic.version = 11 : i64} {
  func.func @_attention_kernel(%arg0: i32, %arg1: memref<2x32x256xf32, #tpu.memory_space<vmem>>, %arg2: memref<32x256xf32, #tpu.memory_space<vmem>>, %arg3: memref<32x256xf32, #tpu.memory_space<vmem>>, %arg4: memref<1x256xf32, #tpu.memory_space<vmem>>, %arg5: memref<32x256xf32, #tpu.memory_space<vmem>>, %arg6: memref<1x256xf32, #tpu.memory_space<vmem>>, %arg7: memref<256x32xf32, #tpu.memory_space<vmem>>, %arg8: memref<2x32x256xf32, #tpu.memory_space<vmem>>) attributes {dimension_semantics = [#tpu.dimension_semantics<parallel>], iteration_bounds = array<i64: 1>, scalar_prefetch = 0 : i64, scratch_operands = 0 : i64, tpu.core_type = #tpu.core_type<tc>, window_params = [{transform_indices = @transform_0, window_bounds = array<i64: 2, 32, 256>}, {pipeline_mode = #tpu.pipeline_mode<synchronous>, transform_indices = @transform_1, window_bounds = array<i64: 32, 256>}, {pipeline_mode = #tpu.pipeline_mode<synchronous>, transform_indices = @transform_2, window_bounds = array<i64: 32, 256>}, {pipeline_mode = #tpu.pipeline_mode<synchronous>, transform_indices = @transform_3, window_bounds = array<i64: 1, 256>}, {pipeline_mode = #tpu.pipeline_mode<synchronous>, transform_indices = @transform_4, window_bounds = array<i64: 32, 256>}, {pipeline_mode = #tpu.pipeline_mode<synchronous>, transform_indices = @transform_5, window_bounds = array<i64: 1, 256>}, {pipeline_mode = #tpu.pipeline_mode<synchronous>, transform_indices = @transform_6, window_bounds = array<i64: 256, 32>}, {transform_indices = @transform_7, window_bounds = array<i64: 2, 32, 256>}]} {
    %c0 = arith.constant 0 : index
    %c0_0 = arith.constant 0 : index
    %c0_1 = arith.constant 0 : index
    %0 = vector.load %arg1[%c0, %c0_0, %c0_1] : memref<2x32x256xf32, #tpu.memory_space<vmem>>, vector<2x32x256xf32>
    %cst = arith.constant dense<0.000000e+00> : vector<2x32xf32>
    %1 = vector.multi_reduction <add>, %0, %cst [2] : vector<2x32x256xf32> to vector<2x32xf32>
    %cst_2 = arith.constant 2.560000e+02 : f32
    %2 = vector.broadcast %cst_2 : f32 to vector<2x32xf32>
    %3 = arith.divf %1, %2 : vector<2x32xf32>
    %c0_3 = arith.constant 0 : index
    %c0_4 = arith.constant 0 : index
    %4 = vector.load %arg2[%c0_3, %c0_4] : memref<32x256xf32, #tpu.memory_space<vmem>>, vector<32x256xf32>
    %cst_5 = arith.constant dense<0.000000e+00> : vector<2x256xf32>
    %5 = tpu.matmul %3, %4, %cst_5 {dimension_numbers = #tpu.dot_dimension_numbers<[1], [0], [0], [1], [0, 0, 1, 1], [], []>} : vector<2x32xf32>, vector<32x256xf32>, vector<2x256xf32> -> vector<2x256xf32>
    %c0_6 = arith.constant 0 : index
    %c0_7 = arith.constant 0 : index
    %6 = vector.load %arg3[%c0_6, %c0_7] : memref<32x256xf32, #tpu.memory_space<vmem>>, vector<32x256xf32>
    %cst_8 = arith.constant dense<0.000000e+00> : vector<2x256xf32>
    %7 = tpu.matmul %3, %6, %cst_8 {dimension_numbers = #tpu.dot_dimension_numbers<[1], [0], [0], [1], [0, 0, 1, 1], [], []>} : vector<2x32xf32>, vector<32x256xf32>, vector<2x256xf32> -> vector<2x256xf32>
    %c0_9 = arith.constant 0 : index
    %c0_10 = arith.constant 0 : index
    %8 = vector.load %arg4[%c0_9, %c0_10] : memref<1x256xf32, #tpu.memory_space<vmem>>, vector<1x256xf32>
    %9 = vector.broadcast %8 : vector<1x256xf32> to vector<2x256xf32>
    %10 = arith.addf %7, %9 : vector<2x256xf32>
    %c0_11 = arith.constant 0 : index
    %c0_12 = arith.constant 0 : index
    %11 = vector.load %arg5[%c0_11, %c0_12] : memref<32x256xf32, #tpu.memory_space<vmem>>, vector<32x256xf32>
    %cst_13 = arith.constant dense<0.000000e+00> : vector<2x256xf32>
    %12 = tpu.matmul %3, %11, %cst_13 {dimension_numbers = #tpu.dot_dimension_numbers<[1], [0], [0], [1], [0, 0, 1, 1], [], []>} : vector<2x32xf32>, vector<32x256xf32>, vector<2x256xf32> -> vector<2x256xf32>
    %c0_14 = arith.constant 0 : index
    %c0_15 = arith.constant 0 : index
    %13 = vector.load %arg6[%c0_14, %c0_15] : memref<1x256xf32, #tpu.memory_space<vmem>>, vector<1x256xf32>
    %14 = vector.broadcast %13 : vector<1x256xf32> to vector<2x256xf32>
    %15 = arith.addf %12, %14 : vector<2x256xf32>
    %16 = arith.mulf %5, %10 : vector<2x256xf32>
    %cst_16 = arith.constant dense<0xFF800000> : vector<2xf32>
    %17 = vector.multi_reduction <maximumf>, %16, %cst_16 [1] : vector<2x256xf32> to vector<2xf32>
    %18 = vector.shape_cast %17 : vector<2xf32> to vector<2x1xf32>
    %19 = vector.broadcast %18 : vector<2x1xf32> to vector<2x256xf32>
    %20 = arith.subf %16, %19 : vector<2x256xf32>
    %21 = math.exp %20 : vector<2x256xf32>
    %c0_17 = arith.constant 0 : index
    %c0_18 = arith.constant 0 : index
    %22 = vector.load %arg7[%c0_17, %c0_18] : memref<256x32xf32, #tpu.memory_space<vmem>>, vector<256x32xf32>
    %cst_19 = arith.constant dense<0.000000e+00> : vector<2x32xf32>
    %23 = tpu.matmul %21, %22, %cst_19 {dimension_numbers = #tpu.dot_dimension_numbers<[1], [0], [0], [1], [0, 0, 1, 1], [], []>} : vector<2x256xf32>, vector<256x32xf32>, vector<2x32xf32> -> vector<2x32xf32>
    %24 = arith.mulf %21, %15 : vector<2x256xf32>
    %c0_20 = arith.constant 0 : index
    %c0_21 = arith.constant 0 : index
    %25 = vector.load %arg7[%c0_20, %c0_21] : memref<256x32xf32, #tpu.memory_space<vmem>>, vector<256x32xf32>
    %cst_22 = arith.constant dense<0.000000e+00> : vector<2x32xf32>
    %26 = tpu.matmul %24, %25, %cst_22 {dimension_numbers = #tpu.dot_dimension_numbers<[1], [0], [0], [1], [0, 0, 1, 1], [], []>} : vector<2x256xf32>, vector<256x32xf32>, vector<2x32xf32> -> vector<2x32xf32>
    %27 = tpu.reciprocal %23 {approx = true} : vector<2x32xf32> -> vector<2x32xf32>
    %28 = arith.mulf %26, %27 : vector<2x32xf32>
    %29 = arith.negf %28 : vector<2x32xf32>
    %30 = math.exp %29 : vector<2x32xf32>
    %cst_23 = arith.constant 1.000000e+00 : f32
    %31 = vector.broadcast %cst_23 : f32 to vector<2x32xf32>
    %32 = arith.addf %31, %30 : vector<2x32xf32>
    %33 = arith.divf %31, %32 : vector<2x32xf32>
    %cst_24 = arith.constant 1.000000e+00 : f32
    %34 = vector.broadcast %cst_24 : f32 to vector<2x32xf32>
    %35 = arith.addf %33, %34 : vector<2x32xf32>
    %c0_25 = arith.constant 0 : index
    %c0_26 = arith.constant 0 : index
    %c0_27 = arith.constant 0 : index
    %36 = vector.load %arg1[%c0_25, %c0_26, %c0_27] : memref<2x32x256xf32, #tpu.memory_space<vmem>>, vector<2x32x256xf32>
    %37 = vector.shape_cast %35 : vector<2x32xf32> to vector<2x32x1xf32>
    %38 = vector.broadcast %37 : vector<2x32x1xf32> to vector<2x32x256xf32>
    %39 = arith.mulf %36, %38 : vector<2x32x256xf32>
    %c0_28 = arith.constant 0 : index
    %c0_29 = arith.constant 0 : index
    %c0_30 = arith.constant 0 : index
    %40 = vector.load %arg8[%c0_28, %c0_29, %c0_30] : memref<2x32x256xf32, #tpu.memory_space<vmem>>, vector<2x32x256xf32>
    tpu.vector_store %arg8[%c0_28, %c0_29, %c0_30], %39 {strides = array<i32>} : memref<2x32x256xf32, #tpu.memory_space<vmem>>, vector<2x32x256xf32>,
    return
  }
  func.func @transform_0(%arg0: i32) -> (i32, i32, i32) {
    %c0_i32 = arith.constant 0 : i32
    %c0_i32_0 = arith.constant 0 : i32
    %c0_i32_1 = arith.constant 0 : i32
    return %arg0, %c0_i32, %c0_i32_0 : i32, i32, i32
  }
  func.func @transform_1(%arg0: i32) -> (i32, i32) {
    %c0_i32 = arith.constant 0 : i32
    %c0_i32_0 = arith.constant 0 : i32
    %c0_i32_1 = arith.constant 0 : i32
    return %c0_i32, %c0_i32_0 : i32, i32
  }
  func.func @transform_2(%arg0: i32) -> (i32, i32) {
    %c0_i32 = arith.constant 0 : i32
    %c0_i32_0 = arith.constant 0 : i32
    %c0_i32_1 = arith.constant 0 : i32
    return %c0_i32, %c0_i32_0 : i32, i32
  }
  func.func @transform_3(%arg0: i32) -> (i32, i32) {
    %c0_i32 = arith.constant 0 : i32
    %c0_i32_0 = arith.constant 0 : i32
    %c0_i32_1 = arith.constant 0 : i32
    return %c0_i32, %c0_i32_0 : i32, i32
  }
  func.func @transform_4(%arg0: i32) -> (i32, i32) {
    %c0_i32 = arith.constant 0 : i32
    %c0_i32_0 = arith.constant 0 : i32
    %c0_i32_1 = arith.constant 0 : i32
    return %c0_i32, %c0_i32_0 : i32, i32
  }
  func.func @transform_5(%arg0: i32) -> (i32, i32) {
    %c0_i32 = arith.constant 0 : i32
    %c0_i32_0 = arith.constant 0 : i32
    %c0_i32_1 = arith.constant 0 : i32
    return %c0_i32, %c0_i32_0 : i32, i32
  }
  func.func @transform_6(%arg0: i32) -> (i32, i32) {
    %c0_i32 = arith.constant 0 : i32
    %c0_i32_0 = arith.constant 0 : i32
    %c0_i32_1 = arith.constant 0 : i32
    return %c0_i32, %c0_i32_0 : i32, i32
  }
  func.func @transform_7(%arg0: i32) -> (i32, i32, i32) {
    %c0_i32 = arith.constant 0 : i32
    %c0_i32_0 = arith.constant 0 : i32
    %c0_i32_1 = arith.constant 0 : i32
    return %arg0, %c0_i32, %c0_i32_0 : i32, i32, i32
  }
}

</mosaic_0001>

<llo_original>
// kernel: attention_forward.1
$region0: #{attention_forward.1}
  #allocation0 [shape = 'u32[]', space=smem, size = 0x4, offset = 0x4, fixed_abs, tag = 'smem constant byte address 0x4 - core index']
  #allocation1 [shape = 'u32[144,128]{1,0:T(1,128)}', space=vmem, size = 0x12000, scoped, tag = 'internal scratch']
  %s0 = inlined_call_operand.vmem [shape: f32[2,32,256], index: 0, kind: input, shape index: {}]
  %s1 = inlined_call_operand.vmem [shape: f32[32,256], index: 1, kind: input, shape index: {}]
  %s2 = inlined_call_operand.vmem [shape: f32[32,256], index: 2, kind: input, shape index: {}]
  %s3 = inlined_call_operand.vmem [shape: f32[1,256], index: 3, kind: input, shape index: {}]
  %s4 = inlined_call_operand.vmem [shape: f32[32,256], index: 4, kind: input, shape index: {}]
  %s5 = inlined_call_operand.vmem [shape: f32[1,256], index: 5, kind: input, shape index: {}]
  %s6 = inlined_call_operand.vmem [shape: f32[256,32], index: 6, kind: input, shape index: {}]
  %s7 = inlined_call_operand.vmem [shape: f32[2,32,256], index: 7, kind: output, shape index: {}]
  %s8 = sld [smem:[#allocation0]]
  $region38: #{attention_forward.1} parent=0
    _
  %s10 = ssub.s32 1, %s8
  %s11 = scalar_select 0, %s10, %s8
  // Predicated region
  $region2: #{attention_forward.1} parent=0 // pred_check
    _
  $region3: #{attention_forward.1} parent=0 // pred_check_branch
    %13 = sbr.rel (0) target = $region5
  $region4: #{attention_forward.1} parent=0 // pred_region
    _
  $region5: #{attention_forward.1} parent=0 // pred_fallthru
    _
  // Predicated region
  $region6: #{attention_forward.1} parent=0 // pred_check
    _
  $region7: #{attention_forward.1} parent=0 // pred_check_branch
    %15 = sbr.rel (0) target = $region9
  $region8: #{attention_forward.1} parent=0 // pred_region
    _
  $region9: #{attention_forward.1} parent=0 // pred_fallthru
    _
  // Predicated region
  $region10: #{attention_forward.1} parent=0 // pred_check
    _
  $region11: #{attention_forward.1} parent=0 // pred_check_branch
    %17 = sbr.rel (0) target = $region13
  $region12: #{attention_forward.1} parent=0 // pred_region
    _
  $region13: #{attention_forward.1} parent=0 // pred_fallthru
    _
  // Predicated region
  $region14: #{attention_forward.1} parent=0 // pred_check
    _
  $region15: #{attention_forward.1} parent=0 // pred_check_branch
    %19 = sbr.rel (0) target = $region17
  $region16: #{attention_forward.1} parent=0 // pred_region
    _
  $region17: #{attention_forward.1} parent=0 // pred_fallthru
    _
  // Predicated region
  $region18: #{attention_forward.1} parent=0 // pred_check
    _
  $region19: #{attention_forward.1} parent=0 // pred_check_branch
    %21 = sbr.rel (0) target = $region21
  $region20: #{attention_forward.1} parent=0 // pred_region
    _
  $region21: #{attention_forward.1} parent=0 // pred_fallthru
    _
  // Predicated region
  $region22: #{attention_forward.1} parent=0 // pred_check
    _
  $region23: #{attention_forward.1} parent=0 // pred_check_branch
    %23 = sbr.rel (0) target = $region25
  $region24: #{attention_forward.1} parent=0 // pred_region
    _
  $region25: #{attention_forward.1} parent=0 // pred_fallthru
    _
  // Predicated region
  $region26: #{attention_forward.1} parent=0 // pred_check
    _
  $region27: #{attention_forward.1} parent=0 // pred_check_branch
    %25 = sbr.rel (0) target = $region29
  $region28: #{attention_forward.1} parent=0 // pred_region
    _
  $region29: #{attention_forward.1} parent=0 // pred_fallthru
    _
  %v26 = vld [vmem:[%s0] sm:$0xff]
  %v27 = vld [vmem:[%s0 + $0x8] sm:$0xff]
  %v28 = vld [vmem:[%s0 + $0x10] sm:$0xff]
  %v29 = vld [vmem:[%s0 + $0x18] sm:$0xff]
  %v30 = vld [vmem:[%s0 + $0x20] sm:$0xff]
  %v31 = vld [vmem:[%s0 + $0x28] sm:$0xff]
  %v32 = vld [vmem:[%s0 + $0x30] sm:$0xff]
  %v33 = vld [vmem:[%s0 + $0x38] sm:$0xff]
  %v34 = vld [vmem:[%s0 + $0x40] sm:$0xff]
  %v35 = vld [vmem:[%s0 + $0x48] sm:$0xff]
  %v36 = vld [vmem:[%s0 + $0x50] sm:$0xff]
  %v37 = vld [vmem:[%s0 + $0x58] sm:$0xff]
  %v38 = vld [vmem:[%s0 + $0x60] sm:$0xff]
  %v39 = vld [vmem:[%s0 + $0x68] sm:$0xff]
  %v40 = vld [vmem:[%s0 + $0x70] sm:$0xff]
  %v41 = vld [vmem:[%s0 + $0x78] sm:$0xff]
  %v42 = vadd.f32 %v26, %v27
  %43 = vadd.xlane.f32.xlu0 %v42
  %v44 = vpop.xlane.xlu0 %43
  %v45 = vadd.f32 %v28, %v29
  %46 = vadd.xlane.f32.xlu0 %v45
  %v47 = vpop.xlane.xlu0 %46
  %v48 = vadd.f32 %v30, %v31
  %49 = vadd.xlane.f32.xlu0 %v48
  %v50 = vpop.xlane.xlu0 %49
  %v51 = vadd.f32 %v32, %v33
  %52 = vadd.xlane.f32.xlu0 %v51
  %v53 = vpop.xlane.xlu0 %52
  %v54 = vadd.f32 %v34, %v35
  %55 = vadd.xlane.f32.xlu0 %v54
  %v56 = vpop.xlane.xlu0 %55
  %v57 = vadd.f32 %v36, %v37
  %58 = vadd.xlane.f32.xlu0 %v57
  %v59 = vpop.xlane.xlu0 %58
  %v60 = vadd.f32 %v38, %v39
  %61 = vadd.xlane.f32.xlu0 %v60
  %v62 = vpop.xlane.xlu0 %61
  %v63 = vadd.f32 %v40, %v41
  %64 = vadd.xlane.f32.xlu0 %v63
  %v65 = vpop.xlane.xlu0 %64
  %v66 = vrcp.pop 256.0
  %v67 = vmul.f32 %v44, %v66
  %v68 = vmul.f32 %v47, %v66
  %v69 = vmul.f32 %v50, %v66
  %v70 = vmul.f32 %v53, %v66
  %v71 = vmul.f32 %v56, %v66
  %v72 = vmul.f32 %v59, %v66
  %v73 = vmul.f32 %v62, %v66
  %v74 = vmul.f32 %v65, %v66
  %v75 = vld [vmem:[%s1] sm:$0xff]
  %v76 = vld [vmem:[%s1 + $0x8] sm:$0xff]
  %v77 = vld [vmem:[%s1 + $0x10] sm:$0xff]
  %v78 = vld [vmem:[%s1 + $0x18] sm:$0xff]
  %v79 = vld [vmem:[%s1 + $0x20] sm:$0xff]
  %v80 = vld [vmem:[%s1 + $0x28] sm:$0xff]
  %v81 = vld [vmem:[%s1 + $0x30] sm:$0xff]
  %v82 = vld [vmem:[%s1 + $0x38] sm:$0xff]
  %v91 = vlaneseq
  %v92 = vand.u32 %v91, 127
  %v93 = vlaneseq
  %v94 = vshrl.u32 %v93, 7
  %v95 = vsub.s32 %v92, %v94
  %v96 = vrot.slane %v67, %v95
  %v97 = vadd.s32 %v92, 4294967288
  %v98 = vlaneseq
  %v99 = vshrl.u32 %v98, 7
  %v100 = vsub.s32 %v97, %v99
  %v101 = vrot.slane %v68, %v100
  %vm102 = vcmask 130112
  %v103 = vsel %vm102, %v101, %v96
  %v104 = vadd.s32 %v92, 4294967280
  %v105 = vlaneseq
  %v106 = vshrl.u32 %v105, 7
  %v107 = vsub.s32 %v104, %v106
  %v108 = vrot.slane %v69, %v107
  %vm109 = vcmask 195712
  %v110 = vsel %vm109, %v108, %v103
  %v111 = vadd.s32 %v92, 4294967272
  %v112 = vlaneseq
  %v113 = vshrl.u32 %v112, 7
  %v114 = vsub.s32 %v111, %v113
  %v115 = vrot.slane %v70, %v114
  %vm116 = vcmask 261312
  %v117 = vsel %vm116, %v115, %v110
  %v118 = vlaneseq
  %v119 = vshrl.u32 %v118, 7
  %v120 = vsub.s32 %v92, %v119
  %v121 = vrot.slane %v71, %v120
  %v122 = vlaneseq
  %v123 = vshrl.u32 %v122, 7
  %v124 = vsub.s32 %v97, %v123
  %v125 = vrot.slane %v72, %v124
  %v126 = vsel %vm102, %v125, %v121
  %v127 = vlaneseq
  %v128 = vshrl.u32 %v127, 7
  %v129 = vsub.s32 %v104, %v128
  %v130 = vrot.slane %v73, %v129
  %v131 = vsel %vm109, %v130, %v126
  %v132 = vlaneseq
  %v133 = vshrl.u32 %v132, 7
  %v134 = vsub.s32 %v111, %v133
  %v135 = vrot.slane %v74, %v134
  %v136 = vsel %vm116, %v135, %v131
  %vm137 = vcmask 1041409
  %v138 = vsel %vm137, %v136, %v117
  %vm139 = vcmask 261120
  %v140 = vsel %vm139, %v138, 0
  %142 = vmatprep.subr.mxu0 %v76
  %143 = vmatpush1.msra.mxu0 %v75
  %144 = vmatprep.subr.mxu0 %v78
  %145 = vmatpush1.msra.mxu0 %v77
  %146 = vmatprep.subr.mxu0 %v80
  %147 = vmatpush1.msra.mxu0 %v79
  %148 = vmatprep.subr.mxu0 %v82
  %149 = vmatpush1.msra.mxu0 %v81
  %150 = vmatprep.subr.mxu0 0.0
  %151 = vmatpush1.msra.mxu0 0.0
  %152 = vmatprep.subr.mxu0 0.0
  %153 = vmatpush1.msra.mxu0 0.0
  %154 = vmatprep.subr.mxu0 0.0
  %155 = vmatpush1.msra.mxu0 0.0
  %156 = vmatprep.subr.mxu0 0.0
  %157 = vmatpush1.msra.mxu0 0.0
  %158 = vmatprep.subr.mxu0 0.0
  %159 = vmatpush1.msra.mxu0 0.0
  %160 = vmatprep.subr.mxu0 0.0
  %161 = vmatpush1.msra.mxu0 0.0
  %162 = vmatprep.subr.mxu0 0.0
  %163 = vmatpush1.msra.mxu0 0.0
  %164 = vmatprep.subr.mxu0 0.0
  %165 = vmatpush1.msra.mxu0 0.0
  %166 = vmatprep.subr.mxu0 0.0
  %167 = vmatpush1.msra.mxu0 0.0
  %168 = vmatprep.subr.mxu0 0.0
  %169 = vmatpush1.msra.mxu0 0.0
  %170 = vmatprep.subr.mxu0 0.0
  %171 = vmatpush1.msra.mxu0 0.0
  %172 = vmatprep.subr.mxu0 0.0
  %173 = vmatpush1.msra.mxu0 0.0
  %174 = vmatprep.subr.mxu0 0.0
  %175 = vmatpush1.msra.mxu0 0.0
  %176 = vmatprep.subr.mxu0 0.0
  %177 = vmatpush1.msra.mxu0 0.0
  %178 = vmatprep.subr.mxu0 0.0
  %179 = vmatpush1.msra.mxu0 0.0
  %180 = vmatprep.subr.mxu0 0.0
  %181 = vmatpush1.msra.mxu0 0.0
  %182 = vmatprep.subr.mxu0 0.0
  %183 = vmatpush1.msra.mxu0 0.0
  %184 = vmatprep.subr.mxu0 0.0
  %185 = vmatpush1.msra.mxu0 0.0
  %186 = vmatprep.subr.mxu0 0.0
  %187 = vmatpush1.msra.mxu0 0.0
  %188 = vmatprep.subr.mxu0 0.0
  %189 = vmatpush1.msra.mxu0 0.0
  %190 = vmatprep.subr.mxu0 0.0
  %191 = vmatpush1.msra.mxu0 0.0
  %192 = vmatprep.subr.mxu0 0.0
  %193 = vmatpush1.msra.mxu0 0.0
  %194 = vmatprep.subr.mxu0 0.0
  %195 = vmatpush1.msra.mxu0 0.0
  %196 = vmatprep.subr.mxu0 0.0
  %197 = vmatpush1.msra.mxu0 0.0
  %198 = vmatprep.subr.mxu0 0.0
  %199 = vmatpush1.msra.mxu0 0.0
  %200 = vmatprep.subr.mxu0 0.0
  %201 = vmatpush1.msra.mxu0 0.0
  %202 = vmatprep.subr.mxu0 0.0
  %203 = vmatpush1.msra.mxu0 0.0
  %204 = vmatprep.subr.mxu0 0.0
  %205 = vmatpush1.msra.mxu0 0.0
  %206 = vmatprep.mubr.f32.mxu0 0.0
  %207 = vmatmul.mubr.f32.gmra.mrb[0].mxu0 %v140
  %v208 = vpop.f32.mrb[0].mxu0
  %v209 = vadd.f32 0.0, %v208
  %v210 = vpop.f32.mrb[0].mxu0
  %v211 = vadd.f32 0.0, %v210
  %212 = vdwg.mxu0
  %v213 = vld [vmem:[%s2] sm:$0xff]
  %v214 = vld [vmem:[%s2 + $0x8] sm:$0xff]
  %v215 = vld [vmem:[%s2 + $0x10] sm:$0xff]
  %v216 = vld [vmem:[%s2 + $0x18] sm:$0xff]
  %v217 = vld [vmem:[%s2 + $0x20] sm:$0xff]
  %v218 = vld [vmem:[%s2 + $0x28] sm:$0xff]
  %v219 = vld [vmem:[%s2 + $0x30] sm:$0xff]
  %v220 = vld [vmem:[%s2 + $0x38] sm:$0xff]
  %v221 = vld [vmem:[%s3] sm:$0x3]
  %v223 = vlaneseq
  %v224 = vshrl.u32 %v223, 7
  %v225 = vsub.s32 0, %v224
  %v226 = vrot.slane %v221, %v225
  %v227 = vlaneseq
  %v228 = vshrl.u32 %v227, 7
  %v229 = vsub.s32 1, %v228
  %v230 = vrot.slane %v221, %v229
  %233 = vmatprep.subr.mxu0 %v214
  %234 = vmatpush1.msra.mxu0 %v213
  %235 = vmatprep.subr.mxu0 %v216
  %236 = vmatpush1.msra.mxu0 %v215
  %237 = vmatprep.subr.mxu0 %v218
  %238 = vmatpush1.msra.mxu0 %v217
  %239 = vmatprep.subr.mxu0 %v220
  %240 = vmatpush1.msra.mxu0 %v219
  %241 = vmatprep.subr.mxu0 0.0
  %242 = vmatpush1.msra.mxu0 0.0
  %243 = vmatprep.subr.mxu0 0.0
  %244 = vmatpush1.msra.mxu0 0.0
  %245 = vmatprep.subr.mxu0 0.0
  %246 = vmatpush1.msra.mxu0 0.0
  %247 = vmatprep.subr.mxu0 0.0
  %248 = vmatpush1.msra.mxu0 0.0
  %249 = vmatprep.subr.mxu0 0.0
  %250 = vmatpush1.msra.mxu0 0.0
  %251 = vmatprep.subr.mxu0 0.0
  %252 = vmatpush1.msra.mxu0 0.0
  %253 = vmatprep.subr.mxu0 0.0
  %254 = vmatpush1.msra.mxu0 0.0
  %255 = vmatprep.subr.mxu0 0.0
  %256 = vmatpush1.msra.mxu0 0.0
  %257 = vmatprep.subr.mxu0 0.0
  %258 = vmatpush1.msra.mxu0 0.0
  %259 = vmatprep.subr.mxu0 0.0
  %260 = vmatpush1.msra.mxu0 0.0
  %261 = vmatprep.subr.mxu0 0.0
  %262 = vmatpush1.msra.mxu0 0.0
  %263 = vmatprep.subr.mxu0 0.0
  %264 = vmatpush1.msra.mxu0 0.0
  %265 = vmatprep.subr.mxu0 0.0
  %266 = vmatpush1.msra.mxu0 0.0
  %267 = vmatprep.subr.mxu0 0.0
  %268 = vmatpush1.msra.mxu0 0.0
  %269 = vmatprep.subr.mxu0 0.0
  %270 = vmatpush1.msra.mxu0 0.0
  %271 = vmatprep.subr.mxu0 0.0
  %272 = vmatpush1.msra.mxu0 0.0
  %273 = vmatprep.subr.mxu0 0.0
  %274 = vmatpush1.msra.mxu0 0.0
  %275 = vmatprep.subr.mxu0 0.0
  %276 = vmatpush1.msra.mxu0 0.0
  %277 = vmatprep.subr.mxu0 0.0
  %278 = vmatpush1.msra.mxu0 0.0
  %279 = vmatprep.subr.mxu0 0.0
  %280 = vmatpush1.msra.mxu0 0.0
  %281 = vmatprep.subr.mxu0 0.0
  %282 = vmatpush1.msra.mxu0 0.0
  %283 = vmatprep.subr.mxu0 0.0
  %284 = vmatpush1.msra.mxu0 0.0
  %285 = vmatprep.subr.mxu0 0.0
  %286 = vmatpush1.msra.mxu0 0.0
  %287 = vmatprep.subr.mxu0 0.0
  %288 = vmatpush1.msra.mxu0 0.0
  %289 = vmatprep.subr.mxu0 0.0
  %290 = vmatpush1.msra.mxu0 0.0
  %291 = vmatprep.subr.mxu0 0.0
  %292 = vmatpush1.msra.mxu0 0.0
  %293 = vmatprep.subr.mxu0 0.0
  %294 = vmatpush1.msra.mxu0 0.0
  %295 = vmatprep.subr.mxu0 0.0
  %296 = vmatpush1.msra.mxu0 0.0
  %297 = vmatprep.mubr.f32.mxu0 0.0
  %298 = vmatmul.mubr.f32.gmra.mrb[0].mxu0 %v140
  %v299 = vpop.f32.mrb[0].mxu0
  %v300 = vadd.f32 %v226, %v299
  %v301 = vpop.f32.mrb[0].mxu0
  %v302 = vadd.f32 %v230, %v301
  %303 = vdwg.mxu0
  %v304 = vld [vmem:[%s4] sm:$0xff]
  %v305 = vld [vmem:[%s4 + $0x8] sm:$0xff]
  %v306 = vld [vmem:[%s4 + $0x10] sm:$0xff]
  %v307 = vld [vmem:[%s4 + $0x18] sm:$0xff]
  %v308 = vld [vmem:[%s4 + $0x20] sm:$0xff]
  %v309 = vld [vmem:[%s4 + $0x28] sm:$0xff]
  %v310 = vld [vmem:[%s4 + $0x30] sm:$0xff]
  %v311 = vld [vmem:[%s4 + $0x38] sm:$0xff]
  %v312 = vld [vmem:[%s5] sm:$0x3]
  %v314 = vlaneseq
  %v315 = vshrl.u32 %v314, 7
  %v316 = vsub.s32 0, %v315
  %v317 = vrot.slane %v312, %v316
  %v318 = vlaneseq
  %v319 = vshrl.u32 %v318, 7
  %v320 = vsub.s32 1, %v319
  %v321 = vrot.slane %v312, %v320
  %324 = vmatprep.subr.mxu0 %v305
  %325 = vmatpush1.msra.mxu0 %v304
  %326 = vmatprep.subr.mxu0 %v307
  %327 = vmatpush1.msra.mxu0 %v306
  %328 = vmatprep.subr.mxu0 %v309
  %329 = vmatpush1.msra.mxu0 %v308
  %330 = vmatprep.subr.mxu0 %v311
  %331 = vmatpush1.msra.mxu0 %v310
  %332 = vmatprep.subr.mxu0 0.0
  %333 = vmatpush1.msra.mxu0 0.0
  %334 = vmatprep.subr.mxu0 0.0
  %335 = vmatpush1.msra.mxu0 0.0
  %336 = vmatprep.subr.mxu0 0.0
  %337 = vmatpush1.msra.mxu0 0.0
  %338 = vmatprep.subr.mxu0 0.0
  %339 = vmatpush1.msra.mxu0 0.0
  %340 = vmatprep.subr.mxu0 0.0
  %341 = vmatpush1.msra.mxu0 0.0
  %342 = vmatprep.subr.mxu0 0.0
  %343 = vmatpush1.msra.mxu0 0.0
  %344 = vmatprep.subr.mxu0 0.0
  %345 = vmatpush1.msra.mxu0 0.0
  %346 = vmatprep.subr.mxu0 0.0
  %347 = vmatpush1.msra.mxu0 0.0
  %348 = vmatprep.subr.mxu0 0.0
  %349 = vmatpush1.msra.mxu0 0.0
  %350 = vmatprep.subr.mxu0 0.0
  %351 = vmatpush1.msra.mxu0 0.0
  %352 = vmatprep.subr.mxu0 0.0
  %353 = vmatpush1.msra.mxu0 0.0
  %354 = vmatprep.subr.mxu0 0.0
  %355 = vmatpush1.msra.mxu0 0.0
  %356 = vmatprep.subr.mxu0 0.0
  %357 = vmatpush1.msra.mxu0 0.0
  %358 = vmatprep.subr.mxu0 0.0
  %359 = vmatpush1.msra.mxu0 0.0
  %360 = vmatprep.subr.mxu0 0.0
  %361 = vmatpush1.msra.mxu0 0.0
  %362 = vmatprep.subr.mxu0 0.0
  %363 = vmatpush1.msra.mxu0 0.0
  %364 = vmatprep.subr.mxu0 0.0
  %365 = vmatpush1.msra.mxu0 0.0
  %366 = vmatprep.subr.mxu0 0.0
  %367 = vmatpush1.msra.mxu0 0.0
  %368 = vmatprep.subr.mxu0 0.0
  %369 = vmatpush1.msra.mxu0 0.0
  %370 = vmatprep.subr.mxu0 0.0
  %371 = vmatpush1.msra.mxu0 0.0
  %372 = vmatprep.subr.mxu0 0.0
  %373 = vmatpush1.msra.mxu0 0.0
  %374 = vmatprep.subr.mxu0 0.0
  %375 = vmatpush1.msra.mxu0 0.0
  %376 = vmatprep.subr.mxu0 0.0
  %377 = vmatpush1.msra.mxu0 0.0
  %378 = vmatprep.subr.mxu0 0.0
  %379 = vmatpush1.msra.mxu0 0.0
  %380 = vmatprep.subr.mxu0 0.0
  %381 = vmatpush1.msra.mxu0 0.0
  %382 = vmatprep.subr.mxu0 0.0
  %383 = vmatpush1.msra.mxu0 0.0
  %384 = vmatprep.subr.mxu0 0.0
  %385 = vmatpush1.msra.mxu0 0.0
  %386 = vmatprep.subr.mxu0 0.0
  %387 = vmatpush1.msra.mxu0 0.0
  %388 = vmatprep.mubr.f32.mxu0 0.0
  %389 = vmatmul.mubr.f32.gmra.mrb[0].mxu0 %v140
  %v390 = vpop.f32.mrb[0].mxu0
  %v391 = vadd.f32 %v317, %v390
  %v392 = vpop.f32.mrb[0].mxu0
  %v393 = vadd.f32 %v321, %v392
  %394 = vdwg.mxu0
  %v395 = vmul.f32 %v209, %v300
  %v396 = vmul.f32 %v211, %v302
  %vm397 = vcmask 1041408
  %v398 = vsel %vm397, %v395, -inf
  %v399 = vsel %vm397, %v396, -inf
  %v400 = vmax.f32 %v398, %v399
  %401 = vmax.xlane.f32.xlu0 %v400
  %v402 = vpop.xlane.xlu0 %401
  %v403 = vsub.f32 %v395, %v402
  %v404 = vsub.f32 %v396, %v402
  %v405 = vmul.f32 %v403, 1.442695
  %v406 = vpow.pop %v405
  %v407 = vmul.f32 %v404, 1.442695
  %v408 = vpow.pop %v407
  %v409 = vld [vmem:[%s6] sm:$0xff]
  %v410 = vld [vmem:[%s6 + $0x8] sm:$0xff]
  %v411 = vld [vmem:[%s6 + $0x10] sm:$0xff]
  %v412 = vld [vmem:[%s6 + $0x18] sm:$0xff]
  %v413 = vld [vmem:[%s6 + $0x20] sm:$0xff]
  %v414 = vld [vmem:[%s6 + $0x28] sm:$0xff]
  %v415 = vld [vmem:[%s6 + $0x30] sm:$0xff]
  %v416 = vld [vmem:[%s6 + $0x38] sm:$0xff]
  %v417 = vld [vmem:[%s6 + $0x40] sm:$0xff]
  %v418 = vld [vmem:[%s6 + $0x48] sm:$0xff]
  %v419 = vld [vmem:[%s6 + $0x50] sm:$0xff]
  %v420 = vld [vmem:[%s6 + $0x58] sm:$0xff]
  %v421 = vld [vmem:[%s6 + $0x60] sm:$0xff]
  %v422 = vld [vmem:[%s6 + $0x68] sm:$0xff]
  %v423 = vld [vmem:[%s6 + $0x70] sm:$0xff]
  %v424 = vld [vmem:[%s6 + $0x78] sm:$0xff]
  %v425 = vld [vmem:[%s6 + $0x80] sm:$0xff]
  %v426 = vld [vmem:[%s6 + $0x88] sm:$0xff]
  %v427 = vld [vmem:[%s6 + $0x90] sm:$0xff]
  %v428 = vld [vmem:[%s6 + $0x98] sm:$0xff]
  %v429 = vld [vmem:[%s6 + $0xa0] sm:$0xff]
  %v430 = vld [vmem:[%s6 + $0xa8] sm:$0xff]
  %v431 = vld [vmem:[%s6 + $0xb0] sm:$0xff]
  %v432 = vld [vmem:[%s6 + $0xb8] sm:$0xff]
  %v433 = vld [vmem:[%s6 + $0xc0] sm:$0xff]
  %v434 = vld [vmem:[%s6 + $0xc8] sm:$0xff]
  %v435 = vld [vmem:[%s6 + $0xd0] sm:$0xff]
  %v436 = vld [vmem:[%s6 + $0xd8] sm:$0xff]
  %v437 = vld [vmem:[%s6 + $0xe0] sm:$0xff]
  %v438 = vld [vmem:[%s6 + $0xe8] sm:$0xff]
  %v439 = vld [vmem:[%s6 + $0xf0] sm:$0xff]
  %v440 = vld [vmem:[%s6 + $0xf8] sm:$0xff]
  %441 = vmatprep.subr.mxu0 0.0
  %442 = vmatpush1.msra.mxu0 %v409
  %443 = vmatprep.subr.mxu0 0.0
  %444 = vmatpush1.msra.mxu0 %v410
  %445 = vmatprep.subr.mxu0 0.0
  %446 = vmatpush1.msra.mxu0 %v411
  %447 = vmatprep.subr.mxu0 0.0
  %448 = vmatpush1.msra.mxu0 %v412
  %449 = vmatprep.subr.mxu0 0.0
  %450 = vmatpush1.msra.mxu0 %v413
  %451 = vmatprep.subr.mxu0 0.0
  %452 = vmatpush1.msra.mxu0 %v414
  %453 = vmatprep.subr.mxu0 0.0
  %454 = vmatpush1.msra.mxu0 %v415
  %455 = vmatprep.subr.mxu0 0.0
  %456 = vmatpush1.msra.mxu0 %v416
  %457 = vmatprep.subr.mxu0 0.0
  %458 = vmatpush1.msra.mxu0 %v417
  %459 = vmatprep.subr.mxu0 0.0
  %460 = vmatpush1.msra.mxu0 %v418
  %461 = vmatprep.subr.mxu0 0.0
  %462 = vmatpush1.msra.mxu0 %v419
  %463 = vmatprep.subr.mxu0 0.0
  %464 = vmatpush1.msra.mxu0 %v420
  %465 = vmatprep.subr.mxu0 0.0
  %466 = vmatpush1.msra.mxu0 %v421
  %467 = vmatprep.subr.mxu0 0.0
  %468 = vmatpush1.msra.mxu0 %v422
  %469 = vmatprep.subr.mxu0 0.0
  %470 = vmatpush1.msra.mxu0 %v423
  %471 = vmatprep.subr.mxu0 0.0
  %472 = vmatpush1.msra.mxu0 %v424
  %473 = vmatprep.subr.mxu0 0.0
  %474 = vmatpush1.msra.mxu0 %v425
  %475 = vmatprep.subr.mxu0 0.0
  %476 = vmatpush1.msra.mxu0 %v426
  %477 = vmatprep.subr.mxu0 0.0
  %478 = vmatpush1.msra.mxu0 %v427
  %479 = vmatprep.subr.mxu0 0.0
  %480 = vmatpush1.msra.mxu0 %v428
  %481 = vmatprep.subr.mxu0 0.0
  %482 = vmatpush1.msra.mxu0 %v429
  %483 = vmatprep.subr.mxu0 0.0
  %484 = vmatpush1.msra.mxu0 %v430
  %485 = vmatprep.subr.mxu0 0.0
  %486 = vmatpush1.msra.mxu0 %v431
  %487 = vmatprep.subr.mxu0 0.0
  %488 = vmatpush1.msra.mxu0 %v432
  %489 = vmatprep.subr.mxu0 0.0
  %490 = vmatpush1.msra.mxu0 %v433
  %491 = vmatprep.subr.mxu0 0.0
  %492 = vmatpush1.msra.mxu0 %v434
  %493 = vmatprep.subr.mxu0 0.0
  %494 = vmatpush1.msra.mxu0 %v435
  %495 = vmatprep.subr.mxu0 0.0
  %496 = vmatpush1.msra.mxu0 %v436
  %497 = vmatprep.subr.mxu0 0.0
  %498 = vmatpush1.msra.mxu0 %v437
  %499 = vmatprep.subr.mxu0 0.0
  %500 = vmatpush1.msra.mxu0 %v438
  %501 = vmatprep.subr.mxu0 0.0
  %502 = vmatpush1.msra.mxu0 %v439
  %503 = vmatprep.subr.mxu0 0.0
  %504 = vmatpush1.msra.mxu0 %v440
  %505 = vmatprep.mubr.f32.mxu0 %v408
  %506 = vmatmul.mubr.f32.gmra.mrb[0].mxu0 %v406
  %v507 = vpop.f32.mrb[0].mxu0
  %v508 = vadd.f32 0.0, %v507
  %v509 = vpop.f32.mrb[0].mxu0
  %510 = vdwg.mxu0
  %v511 = vmul.f32 %v406, %v391
  %v512 = vmul.f32 %v408, %v393
  %513 = vmatprep.subr.mxu0 0.0
  %514 = vmatpush1.msra.mxu0 %v409
  %515 = vmatprep.subr.mxu0 0.0
  %516 = vmatpush1.msra.mxu0 %v410
  %517 = vmatprep.subr.mxu0 0.0
  %518 = vmatpush1.msra.mxu0 %v411
  %519 = vmatprep.subr.mxu0 0.0
  %520 = vmatpush1.msra.mxu0 %v412
  %521 = vmatprep.subr.mxu0 0.0
  %522 = vmatpush1.msra.mxu0 %v413
  %523 = vmatprep.subr.mxu0 0.0
  %524 = vmatpush1.msra.mxu0 %v414
  %525 = vmatprep.subr.mxu0 0.0
  %526 = vmatpush1.msra.mxu0 %v415
  %527 = vmatprep.subr.mxu0 0.0
  %528 = vmatpush1.msra.mxu0 %v416
  %529 = vmatprep.subr.mxu0 0.0
  %530 = vmatpush1.msra.mxu0 %v417
  %531 = vmatprep.subr.mxu0 0.0
  %532 = vmatpush1.msra.mxu0 %v418
  %533 = vmatprep.subr.mxu0 0.0
  %534 = vmatpush1.msra.mxu0 %v419
  %535 = vmatprep.subr.mxu0 0.0
  %536 = vmatpush1.msra.mxu0 %v420
  %537 = vmatprep.subr.mxu0 0.0
  %538 = vmatpush1.msra.mxu0 %v421
  %539 = vmatprep.subr.mxu0 0.0
  %540 = vmatpush1.msra.mxu0 %v422
  %541 = vmatprep.subr.mxu0 0.0
  %542 = vmatpush1.msra.mxu0 %v423
  %543 = vmatprep.subr.mxu0 0.0
  %544 = vmatpush1.msra.mxu0 %v424
  %545 = vmatprep.subr.mxu0 0.0
  %546 = vmatpush1.msra.mxu0 %v425
  %547 = vmatprep.subr.mxu0 0.0
  %548 = vmatpush1.msra.mxu0 %v426
  %549 = vmatprep.subr.mxu0 0.0
  %550 = vmatpush1.msra.mxu0 %v427
  %551 = vmatprep.subr.mxu0 0.0
  %552 = vmatpush1.msra.mxu0 %v428
  %553 = vmatprep.subr.mxu0 0.0
  %554 = vmatpush1.msra.mxu0 %v429
  %555 = vmatprep.subr.mxu0 0.0
  %556 = vmatpush1.msra.mxu0 %v430
  %557 = vmatprep.subr.mxu0 0.0
  %558 = vmatpush1.msra.mxu0 %v431
  %559 = vmatprep.subr.mxu0 0.0
  %560 = vmatpush1.msra.mxu0 %v432
  %561 = vmatprep.subr.mxu0 0.0
  %562 = vmatpush1.msra.mxu0 %v433
  %563 = vmatprep.subr.mxu0 0.0
  %564 = vmatpush1.msra.mxu0 %v434
  %565 = vmatprep.subr.mxu0 0.0
  %566 = vmatpush1.msra.mxu0 %v435
  %567 = vmatprep.subr.mxu0 0.0
  %568 = vmatpush1.msra.mxu0 %v436
  %569 = vmatprep.subr.mxu0 0.0
  %570 = vmatpush1.msra.mxu0 %v437
  %571 = vmatprep.subr.mxu0 0.0
  %572 = vmatpush1.msra.mxu0 %v438
  %573 = vmatprep.subr.mxu0 0.0
  %574 = vmatpush1.msra.mxu0 %v439
  %575 = vmatprep.subr.mxu0 0.0
  %576 = vmatpush1.msra.mxu0 %v440
  %577 = vmatprep.mubr.f32.mxu0 %v512
  %578 = vmatmul.mubr.f32.gmra.mrb[0].mxu0 %v511
  %v579 = vpop.f32.mrb[0].mxu0
  %v580 = vadd.f32 0.0, %v579
  %v581 = vpop.f32.mrb[0].mxu0
  %582 = vdwg.mxu0
  %v583 = vrcp.pop %v508
  %v584 = vmul.f32 %v580, %v583
  %v585 = vxor.u32 %v584, 2147483648
  %v586 = vmul.f32 %v585, 1.442695
  %v587 = vpow.pop %v586
  %v588 = vadd.f32 %v587, 1.0
  %v589 = vrcp.pop %v588
  %v590 = vmul.f32 1.0, %v589
  %v591 = vadd.f32 %v590, 1.0
  %v592 = vlaneseq
  %v593 = vshrl.u32 %v592, 7
  %v594 = vsub.s32 0, %v593
  %v595 = vrot.slane %v591, %v594
  %597 = vbcast.lane.b32.xlu0 %v595, 256
  %v598 = vpop.permute.xlu0 %597
  %s600 = sor.u32 256, 8
  %601 = vbcast.lane.b32.xlu0 %v595, %s600
  %v602 = vpop.permute.xlu0 %601
  %s604 = sor.u32 256, 16
  %605 = vbcast.lane.b32.xlu0 %v595, %s604
  %v606 = vpop.permute.xlu0 %605
  %s608 = sor.u32 256, 24
  %609 = vbcast.lane.b32.xlu0 %v595, %s608
  %v610 = vpop.permute.xlu0 %609
  %v611 = vlaneseq
  %v612 = vshrl.u32 %v611, 7
  %v613 = vsub.s32 1, %v612
  %v614 = vrot.slane %v591, %v613
  %616 = vbcast.lane.b32.xlu0 %v614, 256
  %v617 = vpop.permute.xlu0 %616
  %s619 = sor.u32 256, 8
  %620 = vbcast.lane.b32.xlu0 %v614, %s619
  %v621 = vpop.permute.xlu0 %620
  %s623 = sor.u32 256, 16
  %624 = vbcast.lane.b32.xlu0 %v614, %s623
  %v625 = vpop.permute.xlu0 %624
  %s627 = sor.u32 256, 24
  %628 = vbcast.lane.b32.xlu0 %v614, %s627
  %v629 = vpop.permute.xlu0 %628
  %v630 = vmul.f32 %v26, %v598
  %v631 = vmul.f32 %v27, %v598
  %v632 = vmul.f32 %v28, %v602
  %v633 = vmul.f32 %v29, %v602
  %v634 = vmul.f32 %v30, %v606
  %v635 = vmul.f32 %v31, %v606
  %v636 = vmul.f32 %v32, %v610
  %v637 = vmul.f32 %v33, %v610
  %v638 = vmul.f32 %v34, %v617
  %v639 = vmul.f32 %v35, %v617
  %v640 = vmul.f32 %v36, %v621
  %v641 = vmul.f32 %v37, %v621
  %v642 = vmul.f32 %v38, %v625
  %v643 = vmul.f32 %v39, %v625
  %v644 = vmul.f32 %v40, %v629
  %v645 = vmul.f32 %v41, %v629
  %646 = vst [vmem:[%s7] sm:$0xff] %v630
  %647 = vst [vmem:[%s7 + $0x8] sm:$0xff] %v631
  %648 = vst [vmem:[%s7 + $0x10] sm:$0xff] %v632
  %649 = vst [vmem:[%s7 + $0x18] sm:$0xff] %v633
  %650 = vst [vmem:[%s7 + $0x20] sm:$0xff] %v634
  %651 = vst [vmem:[%s7 + $0x28] sm:$0xff] %v635
  %652 = vst [vmem:[%s7 + $0x30] sm:$0xff] %v636
  %653 = vst [vmem:[%s7 + $0x38] sm:$0xff] %v637
  %654 = vst [vmem:[%s7 + $0x40] sm:$0xff] %v638
  %655 = vst [vmem:[%s7 + $0x48] sm:$0xff] %v639
  %656 = vst [vmem:[%s7 + $0x50] sm:$0xff] %v640
  %657 = vst [vmem:[%s7 + $0x58] sm:$0xff] %v641
  %658 = vst [vmem:[%s7 + $0x60] sm:$0xff] %v642
  %659 = vst [vmem:[%s7 + $0x68] sm:$0xff] %v643
  %660 = vst [vmem:[%s7 + $0x70] sm:$0xff] %v644
  %661 = vst [vmem:[%s7 + $0x78] sm:$0xff] %v645
  // Predicated region
  $region30: #{attention_forward.1} parent=0 // pred_check
    _
  $region31: #{attention_forward.1} parent=0 // pred_check_branch
    %663 = sbr.rel (0) target = $region33
  $region32: #{attention_forward.1} parent=0 // pred_region
    _
  $region33: #{attention_forward.1} parent=0 // pred_fallthru
    _
  // Predicated region
  $region34: #{attention_forward.1} parent=0 // pred_check
    _
  $region35: #{attention_forward.1} parent=0 // pred_check_branch
    %665 = sbr.rel (0) target = $region37
  $region36: #{attention_forward.1} parent=0 // pred_region
    _
  $region37: #{attention_forward.1} parent=0 // pred_fallthru
    _

</llo_original>
